<compile_context>
chip_gen: v7x
topology: tpu7x:2x2x1
jax: 0.10.0
libtpu: 0.0.40
codegen_flags: <defaults>
</compile_context>

<pallas_src>
import numpy as np
import jax
import jax.numpy as jnp
from jax.experimental import pallas as pl
from jax.experimental.pallas import tpu as pltpu


def seqflow_kernel(x_ref, m_ref, bias_ref, lab_ref, lognormc_ref, z_ref, logp_ref):
    K = lognormc_ref.shape[0]
    D = x_ref.shape[0]

    # Single stacked MXU push on xT:
    #   rows [0:D]       -> zT            = W^T xT + b^T
    #   rows [D:D+K*D]   -> -0.5 * A_k z  (per Gaussian, D rows each; scale prefolded)
    #   rows [D+K*D:]    -> (A_k mu_k)^T z
    y = jnp.dot(m_ref[...], x_ref[...], preferred_element_type=jnp.float32) + bias_ref[...]
    zT = y[:D]                                     # (D, TB)
    az = y[D:D + K * D]                            # (K*D, TB), already scaled by -0.5
    term2 = y[D + K * D:]                          # (K, TB)

    z_ref[...] = zT                                # lane-dense, unmasked store

    # term1[k, b] = -0.5 * z_b^T A_k z_b
    # (K*D, TB) -> (K, D, TB) splits sublanes on a vreg boundary (D == 8): layout-free.
    term1 = jnp.sum(az.reshape(K, D, az.shape[-1]) * zT[None, :, :], axis=1)   # (K, TB)

    # constants (lognorm_k - 0.5 * mu_k^T A_k mu_k) prefolded in the wrapper
    logp_all = term1 + term2 + lognormc_ref[...]   # (K, TB)

    # label selection via one-hot compare + tiny sublane reduction
    lab = lab_ref[...]                                                  # (1, TB) int32
    kidx = jax.lax.broadcasted_iota(jnp.int32, logp_all.shape, 0)       # (K, TB)
    logp_ref[...] = jnp.sum(jnp.where(kidx == lab, logp_all, 0.0),
                            axis=0, keepdims=True)                      # (1, TB)


def _round_up(n, m):
    return pl.cdiv(n, m) * m


def seqflow_forward(x, labels, W, b, means, inv_covs, log_norm, neg_logdet, *, max_tb=8192):
    assert max_tb % 128 == 0
    B, D = x.shape
    K = means.shape[0]

    # ---- batch-independent pieces hoisted out of the kernel (pure JAX) ----
    mm = means[:, None, :] - means[None, :, :]
    distloss = jnp.log(1.0 + jnp.mean(jnp.sqrt(jnp.sum(mm * mm, axis=-1))))
    delta_logp = jnp.broadcast_to(neg_logdet.reshape(1, 1), (B, 1))   # toy affine flow: constant log-det

    # ---- precompute the single stacked operand and folded constants (tiny, grid-invariant) ----
    Wt = W.T                                                       # (D, D)
    bT = b.reshape(D, 1)                                           # (D, 1)
    A_cat = inv_covs.reshape(K * D, D)                             # (K*D, D)
    vT = jnp.einsum('kde,ke->kd', inv_covs, means)                 # (K, D)  row k = A_k @ mu_k
    M = jnp.concatenate([Wt, -0.5 * (A_cat @ Wt), vT @ Wt], axis=0)        # (R, D)
    bias = jnp.concatenate([bT, -0.5 * (A_cat @ bT), vT @ bT], axis=0)     # (R, 1)
    c = jnp.einsum('kd,kde,ke->k', means, inv_covs, means).reshape(K, 1)
    lognorm_c = log_norm.reshape(K, 1) - 0.5 * c                           # (K, 1)
    R = D + K * D + K

    # ---- batch tiling: large lane-dense tiles; even tile count when tiled (v7x megacore) ----
    full = _round_up(B, 128)
    if full <= max_tb:
        tb, n_tiles = full, 1
    else:
        n_tiles = pl.cdiv(full, max_tb)
        n_tiles += n_tiles % 2                     # even grid -> balanced across 2 TCs on v7x
        tb = _round_up(pl.cdiv(B, n_tiles), 128)
    B_pad = n_tiles * tb

    xT = jnp.pad(x.T, ((0, 0), (0, B_pad - B)))                           # (D, B_pad)
    labT = jnp.pad(labels.astype(jnp.int32).reshape(1, B), ((0, 0), (0, B_pad - B)))

    zT, logpT = pl.pallas_call(
        seqflow_kernel,
        out_shape=(jax.ShapeDtypeStruct((D, B_pad), jnp.float32),   # zT
                   jax.ShapeDtypeStruct((1, B_pad), jnp.float32)),  # log_p (lane-dense)
        grid=(n_tiles,),
        in_specs=[
            pl.BlockSpec((D, tb), lambda i: (0, i)),        # xT       (tiled over batch lanes)
            pl.BlockSpec((R, D), lambda i: (0, 0)),         # stacked [W^T; -0.5*A W^T; vW^T]
            pl.BlockSpec((R, 1), lambda i: (0, 0)),         # stacked bias column
            pl.BlockSpec((1, tb), lambda i: (0, i)),        # labels   (tiled over batch lanes)
            pl.BlockSpec((K, 1), lambda i: (0, 0)),         # lognorm - 0.5 * mu^T A mu
        ],
        out_specs=(
            pl.BlockSpec((D, tb), lambda i: (0, i)),
            pl.BlockSpec((1, tb), lambda i: (0, i)),
        ),
        compiler_params=pltpu.CompilerParams(dimension_semantics=("parallel",)),
    )(xT, M, bias, labT, lognorm_c)

    z = zT[:, :B].T
    log_p = logpT[0, :B]
    return log_p, distloss, delta_logp, z


if __name__ == "__main__":
    B, D, K = 300, 8, 4          # B not a multiple of the tile -> exercises padding

    key = jax.random.PRNGKey(0)
    k_x, k_lab, k_w, k_b, k_mean, k_vec, k_val = jax.random.split(key, 7)

    # example inputs
    x = jax.random.normal(k_x, (B, D), jnp.float32)
    labels = jax.random.randint(k_lab, (B,), 0, K, jnp.int32)

    # deterministic "model" parameters (toy affine flow)
    W = jnp.eye(D, dtype=jnp.float32) + 0.1 * jax.random.normal(k_w, (D, D), jnp.float32)
    b = 0.1 * jax.random.normal(k_b, (1, D), jnp.float32)

    # deterministic gaussian_params: means + (eigvecs, eigvals) -> inv cov, det
    means = 3.0 * jax.random.normal(k_mean, (K, D), jnp.float32)
    A = np.asarray(jax.random.normal(k_vec, (K, D, D), jnp.float32), dtype=np.float64)
    eigvals = np.asarray(0.5 + jax.random.uniform(k_val, (K, D)), dtype=np.float64)  # in [0.5, 1.5]

    inv_covs_np = np.zeros((K, D, D), np.float64)
    log_dets = np.zeros((K,), np.float64)
    for kk in range(K):
        Q, _ = np.linalg.qr(A[kk])                       # orthonormal eigenvectors
        inv_covs_np[kk] = Q @ np.diag(1.0 / eigvals[kk]) @ Q.T
        log_dets[kk] = np.sum(np.log(eigvals[kk]))
    log_norm_np = (-0.5 * (D * np.log(2.0 * np.pi) + log_dets)).reshape(1, K)
    _, logabsdet = np.linalg.slogdet(np.asarray(W, np.float64))
    neg_logdet = jnp.asarray([[-logabsdet]], jnp.float32)

    inv_covs = jnp.asarray(inv_covs_np, jnp.float32)
    log_norm = jnp.asarray(log_norm_np, jnp.float32)

    # run the Pallas kernel (max_tb=128 forces a multi-step, even-length grid at this small B)
    outs = seqflow_forward(x, labels, W, b, means, inv_covs, log_norm, neg_logdet, max_tb=128)
    log_p, distloss, delta_logp, z = jax.block_until_ready(outs)

    # pure-JAX reference check
    z_ref = x @ W + b
    diff = z_ref[:, None, :] - means[None, :, :]
    quad = jnp.einsum('bkd,kde,bke->bk', diff, inv_covs, diff)
    logps_all = log_norm - 0.5 * quad
    log_p_ref = jnp.take_along_axis(logps_all, labels[:, None], axis=1)[:, 0]
    mm = means[:, None, :] - means[None, :, :]
    distloss_ref = jnp.log(1.0 + jnp.mean(jnp.sqrt(jnp.sum(mm * mm, axis=-1))))

    assert np.allclose(np.asarray(z), np.asarray(z_ref), rtol=1e-2, atol=1e-2)
    assert np.allclose(np.asarray(log_p), np.asarray(log_p_ref), rtol=1e-2, atol=1e-2)
    assert np.allclose(float(distloss), float(distloss_ref), rtol=1e-2, atol=1e-2)
    assert np.allclose(np.asarray(delta_logp), -logabsdet * np.ones((B, 1)), rtol=1e-2, atol=1e-2)

    print("KERNEL_OK")
</pallas_src>

<mosaic_0001>
module attributes {stable_mosaic.version = 11 : i64} {
  func.func @seqflow_kernel(%arg0: i32, %arg1: memref<8x128xf32, #tpu.memory_space<vmem>>, %arg2: memref<44x8xf32, #tpu.memory_space<vmem>>, %arg3: memref<44x1xf32, #tpu.memory_space<vmem>>, %arg4: memref<1x128xi32, #tpu.memory_space<vmem>>, %arg5: memref<4x1xf32, #tpu.memory_space<vmem>>, %arg6: memref<8x128xf32, #tpu.memory_space<vmem>>, %arg7: memref<1x128xf32, #tpu.memory_space<vmem>>) attributes {dimension_semantics = [#tpu.dimension_semantics<parallel>], iteration_bounds = array<i64: 4>, scalar_prefetch = 0 : i64, scratch_operands = 0 : i64, tpu.core_type = #tpu.core_type<tc>, window_params = [{transform_indices = @transform_0, window_bounds = array<i64: 8, 128>}, {pipeline_mode = #tpu.pipeline_mode<synchronous>, transform_indices = @transform_1, window_bounds = array<i64: 44, 8>}, {pipeline_mode = #tpu.pipeline_mode<synchronous>, transform_indices = @transform_2, window_bounds = array<i64: 44, 1>}, {transform_indices = @transform_3, window_bounds = array<i64: 1, 128>}, {pipeline_mode = #tpu.pipeline_mode<synchronous>, transform_indices = @transform_4, window_bounds = array<i64: 4, 1>}, {transform_indices = @transform_5, window_bounds = array<i64: 8, 128>}, {transform_indices = @transform_6, window_bounds = array<i64: 1, 128>}]} {
    %c0 = arith.constant 0 : index
    %c0_0 = arith.constant 0 : index
    %0 = vector.load %arg2[%c0, %c0_0] : memref<44x8xf32, #tpu.memory_space<vmem>>, vector<44x8xf32>
    %c0_1 = arith.constant 0 : index
    %c0_2 = arith.constant 0 : index
    %1 = vector.load %arg1[%c0_1, %c0_2] : memref<8x128xf32, #tpu.memory_space<vmem>>, vector<8x128xf32>
    %cst = arith.constant dense<0.000000e+00> : vector<44x128xf32>
    %2 = tpu.matmul %0, %1, %cst {dimension_numbers = #tpu.dot_dimension_numbers<[1], [0], [0], [1], [0, 0, 1, 1], [], []>} : vector<44x8xf32>, vector<8x128xf32>, vector<44x128xf32> -> vector<44x128xf32>
    %c0_3 = arith.constant 0 : index
    %c0_4 = arith.constant 0 : index
    %3 = vector.load %arg3[%c0_3, %c0_4] : memref<44x1xf32, #tpu.memory_space<vmem>>, vector<44x1xf32>
    %4 = vector.broadcast %3 : vector<44x1xf32> to vector<44x128xf32>
    %5 = arith.addf %2, %4 : vector<44x128xf32>
    %6 = vector.extract_strided_slice %5 {offsets = [0, 0], sizes = [8, 128], strides = [1, 1]} : vector<44x128xf32> to vector<8x128xf32>
    %7 = vector.extract_strided_slice %5 {offsets = [8, 0], sizes = [32, 128], strides = [1, 1]} : vector<44x128xf32> to vector<32x128xf32>
    %8 = vector.extract_strided_slice %5 {offsets = [40, 0], sizes = [4, 128], strides = [1, 1]} : vector<44x128xf32> to vector<4x128xf32>
    %c0_5 = arith.constant 0 : index
    %c0_6 = arith.constant 0 : index
    %9 = vector.load %arg6[%c0_5, %c0_6] : memref<8x128xf32, #tpu.memory_space<vmem>>, vector<8x128xf32>
    tpu.vector_store %arg6[%c0_5, %c0_6], %6 {strides = array<i32>} : memref<8x128xf32, #tpu.memory_space<vmem>>, vector<8x128xf32>,
    %10 = vector.shape_cast %7 : vector<32x128xf32> to vector<4x8x128xf32>
    %11 = vector.shape_cast %6 : vector<8x128xf32> to vector<1x8x128xf32>
    %12 = vector.broadcast %11 : vector<1x8x128xf32> to vector<4x8x128xf32>
    %13 = arith.mulf %10, %12 : vector<4x8x128xf32>
    %cst_7 = arith.constant dense<0.000000e+00> : vector<4x128xf32>
    %14 = vector.multi_reduction <add>, %13, %cst_7 [1] : vector<4x8x128xf32> to vector<4x128xf32>
    %15 = arith.addf %14, %8 : vector<4x128xf32>
    %c0_8 = arith.constant 0 : index
    %c0_9 = arith.constant 0 : index
    %16 = vector.load %arg5[%c0_8, %c0_9] : memref<4x1xf32, #tpu.memory_space<vmem>>, vector<4x1xf32>
    %17 = vector.broadcast %16 : vector<4x1xf32> to vector<4x128xf32>
    %18 = arith.addf %15, %17 : vector<4x128xf32>
    %c0_10 = arith.constant 0 : index
    %c0_11 = arith.constant 0 : index
    %19 = vector.load %arg4[%c0_10, %c0_11] : memref<1x128xi32, #tpu.memory_space<vmem>>, vector<1x128xi32>
    %20 = tpu.iota {dimensions = array<i32: 0>} : vector<4x128xi32>
    %21 = vector.broadcast %19 : vector<1x128xi32> to vector<4x128xi32>
    %22 = arith.cmpi eq, %20, %21 : vector<4x128xi32>
    %cst_12 = arith.constant 0.000000e+00 : f32
    %23 = vector.broadcast %cst_12 : f32 to vector<4x128xf32>
    %24 = arith.select %22, %18, %23 : vector<4x128xi1>, vector<4x128xf32>
    %cst_13 = arith.constant dense<0.000000e+00> : vector<128xf32>
    %25 = vector.multi_reduction <add>, %24, %cst_13 [0] : vector<4x128xf32> to vector<128xf32>
    %26 = vector.shape_cast %25 : vector<128xf32> to vector<1x128xf32>
    %c0_14 = arith.constant 0 : index
    %c0_15 = arith.constant 0 : index
    %27 = vector.load %arg7[%c0_14, %c0_15] : memref<1x128xf32, #tpu.memory_space<vmem>>, vector<1x128xf32>
    tpu.vector_store %arg7[%c0_14, %c0_15], %26 {strides = array<i32>} : memref<1x128xf32, #tpu.memory_space<vmem>>, vector<1x128xf32>,
    return
  }
  func.func @transform_0(%arg0: i32) -> (i32, i32) {
    %c0_i32 = arith.constant 0 : i32
    %c0_i32_0 = arith.constant 0 : i32
    return %c0_i32, %arg0 : i32, i32
  }
  func.func @transform_1(%arg0: i32) -> (i32, i32) {
    %c0_i32 = arith.constant 0 : i32
    %c0_i32_0 = arith.constant 0 : i32
    %c0_i32_1 = arith.constant 0 : i32
    return %c0_i32, %c0_i32_0 : i32, i32
  }
  func.func @transform_2(%arg0: i32) -> (i32, i32) {
    %c0_i32 = arith.constant 0 : i32
    %c0_i32_0 = arith.constant 0 : i32
    %c0_i32_1 = arith.constant 0 : i32
    return %c0_i32, %c0_i32_0 : i32, i32
  }
  func.func @transform_3(%arg0: i32) -> (i32, i32) {
    %c0_i32 = arith.constant 0 : i32
    %c0_i32_0 = arith.constant 0 : i32
    return %c0_i32, %arg0 : i32, i32
  }
  func.func @transform_4(%arg0: i32) -> (i32, i32) {
    %c0_i32 = arith.constant 0 : i32
    %c0_i32_0 = arith.constant 0 : i32
    %c0_i32_1 = arith.constant 0 : i32
    return %c0_i32, %c0_i32_0 : i32, i32
  }
  func.func @transform_5(%arg0: i32) -> (i32, i32) {
    %c0_i32 = arith.constant 0 : i32
    %c0_i32_0 = arith.constant 0 : i32
    return %c0_i32, %arg0 : i32, i32
  }
  func.func @transform_6(%arg0: i32) -> (i32, i32) {
    %c0_i32 = arith.constant 0 : i32
    %c0_i32_0 = arith.constant 0 : i32
    return %c0_i32, %arg0 : i32, i32
  }
}

</mosaic_0001>

<llo_original>
// kernel: tpu_custom_call.1
$region0: #{tpu_custom_call.1}
  #allocation0 [shape = 'u32[]', space=smem, size = 0x4, offset = 0x4, fixed_abs, tag = 'smem constant byte address 0x4 - core index']
  #allocation1 [shape = 'u32[144,128]{1,0:T(1,128)}', space=vmem, size = 0x12000, scoped, tag = 'internal scratch']
  %s0 = inlined_call_operand.vmem [shape: f32[8,512], index: 0, kind: input, shape index: {}]
  %s1 = inlined_call_operand.vmem [shape: f32[44,8], index: 1, kind: input, shape index: {}]
  %s2 = inlined_call_operand.vmem [shape: f32[44,1], index: 2, kind: input, shape index: {}]
  %s3 = inlined_call_operand.vmem [shape: s32[1,512], index: 3, kind: input, shape index: {}]
  %s4 = inlined_call_operand.vmem [shape: f32[4,1], index: 4, kind: input, shape index: {}]
  %s5 = inlined_call_operand.hbm [shape: f32[8,512], index: 5, kind: output, shape index: {0}]
  %s6 = inlined_call_operand.hbm [shape: f32[1,512], index: 6, kind: output, shape index: {1}]
  %7 = xla_tuple %s5, %s6
  %s8 = sld [smem:[#allocation0]]
  $region61: #{tpu_custom_call.1} parent=0
    _
  %s10 = ssub.s32 1, %s8
  %s11 = scalar_select 0, %s10, %s8
  $region1: #{tpu_custom_call.1} parent=0
    #allocation2 [shape = 'u8[8192]{0}', space=vmem, size = 0x2000, scoped, tag = 'output window, operand 0']
    #allocation3 [shape = 's32[2]{0}', space=sflag, size = 0x8, scoped, tag = 'scoped memory for tpu_custom_call.1']
    #allocation4 [shape = 'u8[1024]{0}', space=vmem, size = 0x400, scoped, tag = 'output window, operand 1']
    #allocation5 [shape = 's32[2]{0}', space=sflag, size = 0x8, scoped, tag = 'scoped memory for tpu_custom_call.1']
    %12 = vsyncpa [#allocation3], 0
    %s13 = scalar_lea.sflag [#allocation3], 1
    %14 = vsyncpa %s13, 0
    %15 = vsyncpa [#allocation5], 0
    %s16 = scalar_lea.sflag [#allocation5], 1
    %17 = vsyncpa %s16, 0
    loop: start=0, step=1, limit=6
    $region2: #{tpu_custom_call.1} parent=1 // loop_pre_header
      _
    $region3: #{tpu_custom_call.1} parent=1 // loop_header
      %s19 = sphi 0, %s23
      %p20 = scmp.ge.s32.totalorder %s19, 6
      %s29 = sphi 0, %s31
      %s32 = sphi 0, %s29
      %s33 = sphi 0, %s32
      %s49 = sphi 0, %s33
      %s53 = sphi 0, %s53
      %s55 = sphi 0, %s53
      %s56 = sphi 0, %s55
      %s70 = sphi 0, %s56
      %s74 = sphi 0, %s74
      %s76 = sphi 0, %s74
      %s77 = sphi 0, %s76
      %s91 = sphi 0, %s77
      %s97 = sphi 0, %s99
      %s100 = sphi 0, %s97
      %s101 = sphi 0, %s100
      %s117 = sphi 0, %s101
      %s121 = sphi 0, %s121
      %s123 = sphi 0, %s121
      %s124 = sphi 0, %s123
      %s138 = sphi 0, %s124
      %s144 = sphi 0, %s146
      %s147 = sphi 0, %s144
      %s148 = sphi 0, %s147
      %s164 = sphi 0, %s148
      %s170 = sphi 0, %s172
      %s173 = sphi 0, %s170
      %s174 = sphi 0, %s173
      %s190 = sphi 0, %s174
    $region4: #{tpu_custom_call.1} parent=1 // loop_header_branch
      %22 = sbr.rel (%p20) target = $region8
    $region5: #{tpu_custom_call.1} parent=1 // loop_body
      %s24 = ssub.s32 %s19, 1
      %s25 = ssub.s32 %s19, 2
      %s26 = sadd.s32 %s19, 1
      %s27 = ssub.s32 %s19, %s26
      %p28 = scmp.eq.s32.totalorder %s27, 0
      %s30 = sadd.s32 %s29, 1
      %s31 = scalar_select %p28, %s29, %s30
      %p34 = pneg %p28
      %p35 = scmp.eq.s32.totalorder %s19, 3
      %p36 = por %p34, %p35
      %p37 = scmp.ne.s32.totalorder %s29, %s32
      %p38 = scmp.eq.s32.totalorder %s19, 0
      %p39 = por %p37, %p38
      %p40 = scmp.ne.s32.totalorder %s29, %s32
      %p41 = scmp.eq.s32.totalorder %s24, 3
      %p42 = por %p40, %p41
      %p43 = scmp.ne.s32.totalorder %s32, %s33
      %p44 = scmp.eq.s32.totalorder %s24, 0
      %p45 = por %p43, %p44
      %p46 = scmp.ne.s32.totalorder %s32, %s33
      %p47 = scmp.eq.s32.totalorder %s25, 3
      %p48 = por %p46, %p47
      %p50 = scmp.ne.s32.totalorder %s33, %s49
      %p51 = scmp.eq.s32.totalorder %s25, 0
      %p52 = por %p50, %p51
      %s54 = sadd.s32 %s53, 1
      %p57 = scmp.eq.s32.totalorder %s19, 3
      %p58 = scmp.ne.s32.totalorder %s53, %s55
      %p59 = scmp.eq.s32.totalorder %s19, 0
      %p60 = por %p58, %p59
      %p61 = scmp.ne.s32.totalorder %s53, %s55
      %p62 = scmp.eq.s32.totalorder %s24, 3
      %p63 = por %p61, %p62
      %p64 = scmp.ne.s32.totalorder %s55, %s56
      %p65 = scmp.eq.s32.totalorder %s24, 0
      %p66 = por %p64, %p65
      %p67 = scmp.ne.s32.totalorder %s55, %s56
      %p68 = scmp.eq.s32.totalorder %s25, 3
      %p69 = por %p67, %p68
      %p71 = scmp.ne.s32.totalorder %s56, %s70
      %p72 = scmp.eq.s32.totalorder %s25, 0
      %p73 = por %p71, %p72
      %s75 = sadd.s32 %s74, 1
      %p78 = scmp.eq.s32.totalorder %s19, 3
      %p79 = scmp.ne.s32.totalorder %s74, %s76
      %p80 = scmp.eq.s32.totalorder %s19, 0
      %p81 = por %p79, %p80
      %p82 = scmp.ne.s32.totalorder %s74, %s76
      %p83 = scmp.eq.s32.totalorder %s24, 3
      %p84 = por %p82, %p83
      %p85 = scmp.ne.s32.totalorder %s76, %s77
      %p86 = scmp.eq.s32.totalorder %s24, 0
      %p87 = por %p85, %p86
      %p88 = scmp.ne.s32.totalorder %s76, %s77
      %p89 = scmp.eq.s32.totalorder %s25, 3
      %p90 = por %p88, %p89
      %p92 = scmp.ne.s32.totalorder %s77, %s91
      %p93 = scmp.eq.s32.totalorder %s25, 0
      %p94 = por %p92, %p93
      %s95 = ssub.s32 %s19, %s26
      %p96 = scmp.eq.s32.totalorder %s95, 0
      %s98 = sadd.s32 %s97, 1
      %s99 = scalar_select %p96, %s97, %s98
      %p102 = pneg %p96
      %p103 = scmp.eq.s32.totalorder %s19, 3
      %p104 = por %p102, %p103
      %p105 = scmp.ne.s32.totalorder %s97, %s100
      %p106 = scmp.eq.s32.totalorder %s19, 0
      %p107 = por %p105, %p106
      %p108 = scmp.ne.s32.totalorder %s97, %s100
      %p109 = scmp.eq.s32.totalorder %s24, 3
      %p110 = por %p108, %p109
      %p111 = scmp.ne.s32.totalorder %s100, %s101
      %p112 = scmp.eq.s32.totalorder %s24, 0
      %p113 = por %p111, %p112
      %p114 = scmp.ne.s32.totalorder %s100, %s101
      %p115 = scmp.eq.s32.totalorder %s25, 3
      %p116 = por %p114, %p115
      %p118 = scmp.ne.s32.totalorder %s101, %s117
      %p119 = scmp.eq.s32.totalorder %s25, 0
      %p120 = por %p118, %p119
      %s122 = sadd.s32 %s121, 1
      %p125 = scmp.eq.s32.totalorder %s19, 3
      %p126 = scmp.ne.s32.totalorder %s121, %s123
      %p127 = scmp.eq.s32.totalorder %s19, 0
      %p128 = por %p126, %p127
      %p129 = scmp.ne.s32.totalorder %s121, %s123
      %p130 = scmp.eq.s32.totalorder %s24, 3
      %p131 = por %p129, %p130
      %p132 = scmp.ne.s32.totalorder %s123, %s124
      %p133 = scmp.eq.s32.totalorder %s24, 0
      %p134 = por %p132, %p133
      %p135 = scmp.ne.s32.totalorder %s123, %s124
      %p136 = scmp.eq.s32.totalorder %s25, 3
      %p137 = por %p135, %p136
      %p139 = scmp.ne.s32.totalorder %s124, %s138
      %p140 = scmp.eq.s32.totalorder %s25, 0
      %p141 = por %p139, %p140
      %s142 = ssub.s32 %s19, %s26
      %p143 = scmp.eq.s32.totalorder %s142, 0
      %s145 = sadd.s32 %s144, 1
      %s146 = scalar_select %p143, %s144, %s145
      %p149 = pneg %p143
      %p150 = scmp.eq.s32.totalorder %s19, 3
      %p151 = por %p149, %p150
      %p152 = scmp.ne.s32.totalorder %s144, %s147
      %p153 = scmp.eq.s32.totalorder %s19, 0
      %p154 = por %p152, %p153
      %p155 = scmp.ne.s32.totalorder %s144, %s147
      %p156 = scmp.eq.s32.totalorder %s24, 3
      %p157 = por %p155, %p156
      %p158 = scmp.ne.s32.totalorder %s147, %s148
      %p159 = scmp.eq.s32.totalorder %s24, 0
      %p160 = por %p158, %p159
      %p161 = scmp.ne.s32.totalorder %s147, %s148
      %p162 = scmp.eq.s32.totalorder %s25, 3
      %p163 = por %p161, %p162
      %p165 = scmp.ne.s32.totalorder %s148, %s164
      %p166 = scmp.eq.s32.totalorder %s25, 0
      %p167 = por %p165, %p166
      %s168 = ssub.s32 %s19, %s26
      %p169 = scmp.eq.s32.totalorder %s168, 0
      %s171 = sadd.s32 %s170, 1
      %s172 = scalar_select %p169, %s170, %s171
      %p175 = pneg %p169
      %p176 = scmp.eq.s32.totalorder %s19, 3
      %p177 = por %p175, %p176
      %p178 = scmp.ne.s32.totalorder %s170, %s173
      %p179 = scmp.eq.s32.totalorder %s19, 0
      %p180 = por %p178, %p179
      %p181 = scmp.ne.s32.totalorder %s170, %s173
      %p182 = scmp.eq.s32.totalorder %s24, 3
      %p183 = por %p181, %p182
      %p184 = scmp.ne.s32.totalorder %s173, %s174
      %p185 = scmp.eq.s32.totalorder %s24, 0
      %p186 = por %p184, %p185
      %p187 = scmp.ne.s32.totalorder %s173, %s174
      %p188 = scmp.eq.s32.totalorder %s25, 3
      %p189 = por %p187, %p188
      %p191 = scmp.ne.s32.totalorder %s174, %s190
      %p192 = scmp.eq.s32.totalorder %s25, 0
      %p193 = por %p191, %p192
      %p194 = scmp.le.s32.totalorder 1, %s19
      %p195 = scmp.lt.s32.totalorder %s19, 5
      %p196 = pnand %p194, %p195
      %p197 = pneg %p196
      // Predicated region
      $region9: #{tpu_custom_call.1} parent=5 // pred_check
        _
      $region10: #{tpu_custom_call.1} parent=5 // pred_check_branch
        %199 = sbr.rel (%p196) target = $region12
      $region11: #{tpu_custom_call.1} parent=5 // pred_region
        %s200 = ssub.s32 %s19, 1
        // Predicated region
        $region13: #{tpu_custom_call.1} parent=11 // pred_check
          %p201 = pneg %p66
        $region14: #{tpu_custom_call.1} parent=11 // pred_check_branch
          %203 = sbr.rel (%p201) target = $region16
        $region15: #{tpu_custom_call.1} parent=11 // pred_region
          _
        $region16: #{tpu_custom_call.1} parent=11 // pred_fallthru
          _
        // Predicated region
        $region17: #{tpu_custom_call.1} parent=11 // pred_check
          %p204 = pneg %p87
        $region18: #{tpu_custom_call.1} parent=11 // pred_check_branch
          %206 = sbr.rel (%p204) target = $region20
        $region19: #{tpu_custom_call.1} parent=11 // pred_region
          _
        $region20: #{tpu_custom_call.1} parent=11 // pred_fallthru
          _
        // Predicated region
        $region21: #{tpu_custom_call.1} parent=11 // pred_check
          %p207 = pneg %p134
        $region22: #{tpu_custom_call.1} parent=11 // pred_check_branch
          %209 = sbr.rel (%p207) target = $region24
        $region23: #{tpu_custom_call.1} parent=11 // pred_region
          _
        $region24: #{tpu_custom_call.1} parent=11 // pred_fallthru
          _
      $region12: #{tpu_custom_call.1} parent=5 // pred_fallthru
        _
      %p210 = scmp.lt.s32.totalorder %s19, 4
      // Predicated region
      $region25: #{tpu_custom_call.1} parent=5 // pred_check
        %p211 = pneg %p210
      $region26: #{tpu_custom_call.1} parent=5 // pred_check_branch
        %213 = sbr.rel (%p211) target = $region28
      $region27: #{tpu_custom_call.1} parent=5 // pred_region
        // Predicated region
        $region29: #{tpu_custom_call.1} parent=27 // pred_check
          %p214 = pneg %p39
        $region30: #{tpu_custom_call.1} parent=27 // pred_check_branch
          %216 = sbr.rel (%p214) target = $region32
        $region31: #{tpu_custom_call.1} parent=27 // pred_region
          %p217 = scmp.lt.s32.totalorder %s19, 3
          %s218 = scalar_select %p217, %s19, 3
          %s219 = smul.addr %s218, 8
          %s220 = scalar_lea.vmem %s0, %s219
        $region32: #{tpu_custom_call.1} parent=27 // pred_fallthru
          _
        // Predicated region
        $region33: #{tpu_custom_call.1} parent=27 // pred_check
          %p221 = pneg %p107
        $region34: #{tpu_custom_call.1} parent=27 // pred_check_branch
          %223 = sbr.rel (%p221) target = $region36
        $region35: #{tpu_custom_call.1} parent=27 // pred_region
          %p224 = scmp.lt.s32.totalorder %s19, 3
          %s225 = scalar_select %p224, %s19, 3
          %s226 = scalar_lea.vmem %s3, %s225
        $region36: #{tpu_custom_call.1} parent=27 // pred_fallthru
          _
      $region28: #{tpu_custom_call.1} parent=5 // pred_fallthru
        _
      %p227 = scmp.le.s32.totalorder 1, %s19
      %p228 = scmp.lt.s32.totalorder %s19, 5
      %p229 = pnand %p227, %p228
      %p230 = pneg %p229
      // Predicated region
      $region37: #{tpu_custom_call.1} parent=5 // pred_check
        _
      $region38: #{tpu_custom_call.1} parent=5 // pred_check_branch
        %232 = sbr.rel (%p229) target = $region40
      $region39: #{tpu_custom_call.1} parent=5 // pred_region
        %s233 = ssub.s32 %s19, 1
        %p234 = scmp.lt.s32.totalorder %s24, 3
        %s235 = scalar_select %p234, %s24, 3
        %s236 = smul.addr %s235, 8
        %s237 = scalar_lea.vmem %s0, %s236
        %p238 = pneg %p45
        %p239 = pneg %p42
        %p240 = pneg %p66
        %p241 = pneg %p63
        %p242 = pneg %p87
        %p243 = pneg %p84
        %p244 = scmp.lt.s32.totalorder %s24, 3
        %s245 = scalar_select %p244, %s24, 3
        %s246 = scalar_lea.vmem %s3, %s245
        %p247 = pneg %p113
        %p248 = pneg %p110
        %p249 = pneg %p134
        %p250 = pneg %p131
        %p251 = pneg %p160
        %p252 = pneg %p157
        %s253 = sand.u32 %s147, 1
        %s254 = scalar_lea.sflag [#allocation3], %s253
        %s255 = sand.u32 %s147, 1
        %s256 = smul.addr %s255, 8
        %s257 = scalar_lea.vmem [#allocation2], %s256
        %p258 = pneg %p186
        %p259 = pneg %p183
        %s260 = sand.u32 %s173, 1
        %s261 = scalar_lea.sflag [#allocation5], %s260
        %s262 = sand.u32 %s173, 1
        %s263 = scalar_lea.vmem [#allocation4], %s262
        %p264 = scmp.lt.s32.totalorder %s24, 3
        %s265 = scalar_select %p264, %s24, 3
        %s266 = smul.addr %s265, 8
        %s267 = scalar_lea.vmem %s0, %s266
        %p268 = scmp.lt.s32.totalorder %s24, 3
        %s269 = scalar_select %p268, %s24, 3
        %s270 = scalar_lea.vmem %s3, %s269
        %v271 = vld [vmem:[%s1] sm:$0xff]
        %v272 = vld [vmem:[%s1 + $0x8] sm:$0xff]
        %v273 = vld [vmem:[%s1 + $0x10] sm:$0xff]
        %v274 = vld [vmem:[%s1 + $0x18] sm:$0xff]
        %v275 = vld [vmem:[%s1 + $0x20] sm:$0xff]
        %v276 = vld [vmem:[%s1 + $0x28] sm:$0xf]
        %v277 = vld [vmem:[%s267] sm:$0xff]
        %v278 = vld [vmem:[%s2] sm:$0xff]
        %v279 = vld [vmem:[%s2 + $0x8] sm:$0xff]
        %v280 = vld [vmem:[%s2 + $0x10] sm:$0xff]
        %v281 = vld [vmem:[%s2 + $0x18] sm:$0xff]
        %v282 = vld [vmem:[%s2 + $0x20] sm:$0xff]
        %v283 = vld [vmem:[%s2 + $0x28] sm:$0xf]
        %285 = vset.pattern.permute.xlu0 0
        %286 = vperm.xlu0 %285, %v278
        %v287 = vpop.permute.xlu0 %286
        %290 = vset.pattern.permute.xlu0 0
        %291 = vperm.xlu0 %290, %v279
        %v292 = vpop.permute.xlu0 %291
        %295 = vset.pattern.permute.xlu0 0
        %296 = vperm.xlu0 %295, %v280
        %v297 = vpop.permute.xlu0 %296
        %300 = vset.pattern.permute.xlu0 0
        %301 = vperm.xlu0 %300, %v281
        %v302 = vpop.permute.xlu0 %301
        %305 = vset.pattern.permute.xlu0 0
        %306 = vperm.xlu0 %305, %v282
        %v307 = vpop.permute.xlu0 %306
        %310 = vset.pattern.permute.xlu0 0
        %311 = vperm.xlu0 %310, %v283
        %v312 = vpop.permute.xlu0 %311
        %vm314 = vcmask 64512
        %v316 = vsel %vm314, %v271, 0
        %v319 = vsel %vm314, %v272, 0
        %v322 = vsel %vm314, %v273, 0
        %v325 = vsel %vm314, %v274, 0
        %v328 = vsel %vm314, %v275, 0
        %v331 = vsel %vm314, %v276, 0
        %333 = vmatprep.subr.mxu0 0.0
        %334 = vmatpush1.msra.mxu0 %v277
        %335 = vmatprep.subr.mxu0 0.0
        %336 = vmatpush1.msra.mxu0 0.0
        %337 = vmatprep.subr.mxu0 0.0
        %338 = vmatpush1.msra.mxu0 0.0
        %339 = vmatprep.subr.mxu0 0.0
        %340 = vmatpush1.msra.mxu0 0.0
        %341 = vmatprep.subr.mxu0 0.0
        %342 = vmatpush1.msra.mxu0 0.0
        %343 = vmatprep.subr.mxu0 0.0
        %344 = vmatpush1.msra.mxu0 0.0
        %345 = vmatprep.subr.mxu0 0.0
        %346 = vmatpush1.msra.mxu0 0.0
        %347 = vmatprep.subr.mxu0 0.0
        %348 = vmatpush1.msra.mxu0 0.0
        %349 = vmatprep.subr.mxu0 0.0
        %350 = vmatpush1.msra.mxu0 0.0
        %351 = vmatprep.subr.mxu0 0.0
        %352 = vmatpush1.msra.mxu0 0.0
        %353 = vmatprep.subr.mxu0 0.0
        %354 = vmatpush1.msra.mxu0 0.0
        %355 = vmatprep.subr.mxu0 0.0
        %356 = vmatpush1.msra.mxu0 0.0
        %357 = vmatprep.subr.mxu0 0.0
        %358 = vmatpush1.msra.mxu0 0.0
        %359 = vmatprep.subr.mxu0 0.0
        %360 = vmatpush1.msra.mxu0 0.0
        %361 = vmatprep.subr.mxu0 0.0
        %362 = vmatpush1.msra.mxu0 0.0
        %363 = vmatprep.subr.mxu0 0.0
        %364 = vmatpush1.msra.mxu0 0.0
        %365 = vmatprep.subr.mxu0 0.0
        %366 = vmatpush1.msra.mxu0 0.0
        %367 = vmatprep.subr.mxu0 0.0
        %368 = vmatpush1.msra.mxu0 0.0
        %369 = vmatprep.subr.mxu0 0.0
        %370 = vmatpush1.msra.mxu0 0.0
        %371 = vmatprep.subr.mxu0 0.0
        %372 = vmatpush1.msra.mxu0 0.0
        %373 = vmatprep.subr.mxu0 0.0
        %374 = vmatpush1.msra.mxu0 0.0
        %375 = vmatprep.subr.mxu0 0.0
        %376 = vmatpush1.msra.mxu0 0.0
        %377 = vmatprep.subr.mxu0 0.0
        %378 = vmatpush1.msra.mxu0 0.0
        %379 = vmatprep.subr.mxu0 0.0
        %380 = vmatpush1.msra.mxu0 0.0
        %381 = vmatprep.subr.mxu0 0.0
        %382 = vmatpush1.msra.mxu0 0.0
        %383 = vmatprep.subr.mxu0 0.0
        %384 = vmatpush1.msra.mxu0 0.0
        %385 = vmatprep.subr.mxu0 0.0
        %386 = vmatpush1.msra.mxu0 0.0
        %387 = vmatprep.subr.mxu0 0.0
        %388 = vmatpush1.msra.mxu0 0.0
        %389 = vmatprep.subr.mxu0 0.0
        %390 = vmatpush1.msra.mxu0 0.0
        %391 = vmatprep.subr.mxu0 0.0
        %392 = vmatpush1.msra.mxu0 0.0
        %393 = vmatprep.subr.mxu0 0.0
        %394 = vmatpush1.msra.mxu0 0.0
        %395 = vmatprep.subr.mxu0 0.0
        %396 = vmatpush1.msra.mxu0 0.0
        %397 = vmatprep.mubr.f32.mxu0 0.0
        %398 = vmatmul.mubr.f32.gmra.mrb[0].mxu0 %v316
        %v399 = vpop.f32.mrb[0].mxu0
        %v400 = vadd.f32 %v287, %v399
        %v401 = vpop.f32.mrb[0].mxu0
        %402 = vmatprep.mubr.f32.mxu0 0.0
        %403 = vmatmul.mubr.f32.gmra.mrb[0].mxu0 %v319
        %v404 = vpop.f32.mrb[0].mxu0
        %v405 = vadd.f32 %v292, %v404
        %v406 = vpop.f32.mrb[0].mxu0
        %407 = vmatprep.mubr.f32.mxu0 0.0
        %408 = vmatmul.mubr.f32.gmra.mrb[0].mxu0 %v322
        %v409 = vpop.f32.mrb[0].mxu0
        %v410 = vadd.f32 %v297, %v409
        %v411 = vpop.f32.mrb[0].mxu0
        %412 = vmatprep.mubr.f32.mxu0 0.0
        %413 = vmatmul.mubr.f32.gmra.mrb[0].mxu0 %v325
        %v414 = vpop.f32.mrb[0].mxu0
        %v415 = vadd.f32 %v302, %v414
        %v416 = vpop.f32.mrb[0].mxu0
        %417 = vmatprep.mubr.f32.mxu0 0.0
        %418 = vmatmul.mubr.f32.gmra.mrb[0].mxu0 %v328
        %v419 = vpop.f32.mrb[0].mxu0
        %v420 = vadd.f32 %v307, %v419
        %v421 = vpop.f32.mrb[0].mxu0
        %422 = vmatprep.mubr.f32.mxu0 0.0
        %423 = vmatmul.mubr.f32.gmra.mrb[0].mxu0 %v331
        %v424 = vpop.f32.mrb[0].mxu0
        %v425 = vadd.f32 %v312, %v424
        %v426 = vpop.f32.mrb[0].mxu0
        %427 = vdwg.mxu0
        %428 = vst [vmem:[%s257] sm:$0xff] %v400
        %v429 = vmul.f32 %v405, %v400
        %v430 = vmul.f32 %v410, %v400
        %v431 = vmul.f32 %v415, %v400
        %v432 = vmul.f32 %v420, %v400
        %v433 = vrot.slane %v429, 4
        %v434 = vadd.f32 %v429, %v433
        %v435 = vrot.slane %v434, 2
        %v436 = vadd.f32 %v434, %v435
        %v437 = vrot.slane %v436, 1
        %v438 = vadd.f32 %v436, %v437
        %v439 = vrot.slane %v430, 4
        %v440 = vadd.f32 %v430, %v439
        %v441 = vrot.slane %v440, 2
        %v442 = vadd.f32 %v440, %v441
        %v443 = vrot.slane %v442, 1
        %v444 = vadd.f32 %v442, %v443
        %v445 = vrot.slane %v431, 4
        %v446 = vadd.f32 %v431, %v445
        %v447 = vrot.slane %v446, 2
        %v448 = vadd.f32 %v446, %v447
        %v449 = vrot.slane %v448, 1
        %v450 = vadd.f32 %v448, %v449
        %v451 = vrot.slane %v432, 4
        %v452 = vadd.f32 %v432, %v451
        %v453 = vrot.slane %v452, 2
        %v454 = vadd.f32 %v452, %v453
        %v455 = vrot.slane %v454, 1
        %v456 = vadd.f32 %v454, %v455
        %v458 = vrot.slane %v425, 1
        %v459 = vrot.slane %v425, 2
        %v460 = vrot.slane %v425, 3
        %v465 = vadd.f32 %v438, %v425
        %v466 = vadd.f32 %v444, %v458
        %v467 = vadd.f32 %v450, %v459
        %v468 = vadd.f32 %v456, %v460
        %v469 = vld [vmem:[%s4] sm:$0xf]
        %471 = vset.pattern.permute.xlu0 0
        %472 = vperm.xlu0 %471, %v469
        %v473 = vpop.permute.xlu0 %472
        %v474 = vrot.slane %v473, 1
        %v475 = vrot.slane %v473, 2
        %v476 = vrot.slane %v473, 3
        %v481 = vadd.f32 %v465, %v473
        %v482 = vadd.f32 %v466, %v474
        %v483 = vadd.f32 %v467, %v475
        %v484 = vadd.f32 %v468, %v476
        %v485 = vld [vmem:[%s270] sm:$0x1]
        %v486 = vlaneseq
        %v487 = vshrl.u32 %v486, 7
        %v488 = vlaneseq
        %v489 = vshrl.u32 %v488, 7
        %v490 = vsub.s32 0, %v489
        %v491 = vrot.slane %v485, %v490
        %vm492 = vcmp.eq.s32.totalorder %v487, %v491
        %v497 = vrot.slane %v482, 7
        %vm498 = vcmask 1041409
        %v499 = vsel %vm498, %v497, %v481
        %v500 = vrot.slane %v483, 6
        %vm501 = vcmask 1042434
        %v502 = vsel %vm501, %v500, %v499
        %v503 = vrot.slane %v484, 5
        %vm504 = vcmask 1043459
        %v505 = vsel %vm504, %v503, %v502
        %v507 = vsel %vm492, %v505, 0.0
        %vm508 = vcmask 1043456
        %v509 = vsel %vm508, %v507, 0.0
        %v510 = vrot.slane %v509, 4
        %v511 = vadd.f32 %v509, %v510
        %v512 = vrot.slane %v511, 2
        %v513 = vadd.f32 %v511, %v512
        %v514 = vrot.slane %v513, 1
        %v515 = vadd.f32 %v513, %v514
        %516 = vst [vmem:[%s263] sm:$0x1] %v515
        %s517 = sand.u32 %s147, 1
        %s518 = scalar_lea.sflag [#allocation3], %s517
        %s519 = sand.u32 %s147, 1
        %s520 = smul.addr %s519, 8
        %s521 = scalar_lea.vmem [#allocation2], %s520
        %s522 = sand.u32 %s173, 1
        %s523 = scalar_lea.sflag [#allocation5], %s522
        %s524 = sand.u32 %s173, 1
        %s525 = scalar_lea.vmem [#allocation4], %s524
        // Predicated region
        $region41: #{tpu_custom_call.1} parent=39 // pred_check
          %p526 = pneg %p157
        $region42: #{tpu_custom_call.1} parent=39 // pred_check_branch
          %528 = sbr.rel (%p526) target = $region44
        $region43: #{tpu_custom_call.1} parent=39 // pred_region
          %s530 = ssub.s32 128, 128
          %531 = vsyncadd %s518, %s530
          %s532 = smul.addr %s24, 128
          %s533 = scalar_lea.hbm %s5, %s532
          %s535 = sshll.u32 %s521, 4
          %s536 = int_to_ptr.vmem [resolvable:$true] %s535
          %538 = dma.vmem_to_hbm [thread:$0]  %s536, 128, %s533, %s518
        $region44: #{tpu_custom_call.1} parent=39 // pred_fallthru
          _
        // Predicated region
        $region45: #{tpu_custom_call.1} parent=39 // pred_check
          %p539 = pneg %p183
        $region46: #{tpu_custom_call.1} parent=39 // pred_check_branch
          %541 = sbr.rel (%p539) target = $region48
        $region47: #{tpu_custom_call.1} parent=39 // pred_region
          %s543 = ssub.s32 16, 16
          %544 = vsyncadd %s523, %s543
          %s545 = smul.addr %s24, 16
          %s546 = scalar_lea.hbm %s6, %s545
          %s548 = sshll.u32 %s525, 4
          %s549 = int_to_ptr.vmem [resolvable:$true] %s548
          %551 = dma.vmem_to_hbm [thread:$0]  %s549, 16, %s546, %s523
        $region48: #{tpu_custom_call.1} parent=39 // pred_fallthru
          _
      $region40: #{tpu_custom_call.1} parent=5 // pred_fallthru
        _
      %p552 = scmp.le.s32.totalorder 2, %s19
      // Predicated region
      $region49: #{tpu_custom_call.1} parent=5 // pred_check
        %p553 = pneg %p552
      $region50: #{tpu_custom_call.1} parent=5 // pred_check_branch
        %555 = sbr.rel (%p553) target = $region52
      $region51: #{tpu_custom_call.1} parent=5 // pred_region
        %s556 = ssub.s32 %s19, 2
        // Predicated region
        $region53: #{tpu_custom_call.1} parent=51 // pred_check
          %p557 = pneg %p163
        $region54: #{tpu_custom_call.1} parent=51 // pred_check_branch
          %559 = sbr.rel (%p557) target = $region56
        $region55: #{tpu_custom_call.1} parent=51 // pred_region
          %s560 = sand.u32 %s148, 1
          %s561 = scalar_lea.sflag [#allocation3], %s560
          %s562 = sand.u32 %s148, 1
          %s563 = smul.addr %s562, 8
          %s564 = scalar_lea.vmem [#allocation2], %s563
          %565 = dma.done %s561, 128
        $region56: #{tpu_custom_call.1} parent=51 // pred_fallthru
          _
        // Predicated region
        $region57: #{tpu_custom_call.1} parent=51 // pred_check
          %p566 = pneg %p189
        $region58: #{tpu_custom_call.1} parent=51 // pred_check_branch
          %568 = sbr.rel (%p566) target = $region60
        $region59: #{tpu_custom_call.1} parent=51 // pred_region
          %s569 = sand.u32 %s174, 1
          %s570 = scalar_lea.sflag [#allocation5], %s569
          %s571 = sand.u32 %s174, 1
          %s572 = scalar_lea.vmem [#allocation4], %s571
          %573 = dma.done %s570, 16
        $region60: #{tpu_custom_call.1} parent=51 // pred_fallthru
          _
      $region52: #{tpu_custom_call.1} parent=5 // pred_fallthru
        _
    $region6: #{tpu_custom_call.1} parent=1 // loop_footer
      %s23 = sadd.s32 1, %s19
    $region7: #{tpu_custom_call.1} parent=1 // loop_footer_branch
      %18 = sbr.rel target = $region3
    $region8: #{tpu_custom_call.1} parent=1 // loop_exit
      _
    %574 = vsyncpa [#allocation3], 1
    %s575 = scalar_lea.sflag [#allocation3], 1
    %576 = vsyncpa %s575, 1
    %577 = vsyncpa [#allocation5], 1
    %s578 = scalar_lea.sflag [#allocation5], 1
    %579 = vsyncpa %s578, 1

</llo_original>
